<compile_context>
chip_gen: v7x
topology: tpu7x:2x2x1
jax: 0.10.0
libtpu: 0.0.40
codegen_flags: <defaults>
</compile_context>

<pallas_src>
import functools

import jax
import jax.numpy as jnp
from jax.experimental import pallas as pl
from jax.experimental.pallas import tpu as pltpu

IN_F, H1, H2, OUT_F = 15, 64, 64, 30


def _mlp_kernel(x_ref, w1_ref, b1_ref, w2_ref, b2_ref, w3_ref, b3_ref, o_ref):
    # fc1 + relu: bf16 operands feed the MXU natively; accumulate in fp32.
    x16 = x_ref[...].astype(jnp.bfloat16)
    h = jnp.dot(x16, w1_ref[...], preferred_element_type=jnp.float32)
    h = jnp.maximum(h + b1_ref[...], 0.0)
    # fc2 + relu  (dropout p=0.2 is identity in eval/inference mode)
    # TODO(synk): training-mode dropout (pltpu.prng_random_bits mask) not wired in.
    h = jnp.dot(h.astype(jnp.bfloat16), w2_ref[...],
                preferred_element_type=jnp.float32)
    h = jnp.maximum(h + b2_ref[...], 0.0)
    # fc3 + relu
    h = jnp.dot(h.astype(jnp.bfloat16), w3_ref[...],
                preferred_element_type=jnp.float32)
    # NOTE: OUT_F=30 < 128 lanes -> masked vst on the final store.  A
    # feature-major (transposed) layout would make this lane-dense, but the
    # caller consumes batch-major fp32 output, so the masked store is accepted.
    o_ref[...] = jnp.maximum(h + b3_ref[...], 0.0).astype(o_ref.dtype)


@functools.partial(jax.jit, static_argnames=("block_b",))
def regressor_forward(x, params, *, block_b=8192):
    """Pallas MLP forward: relu(fc1) -> [dropout=id] -> relu(fc2) -> relu(fc3).

    The batch is tiled into >=4 grid steps (rounded to a sublane multiple of 8,
    capped at `block_b`) so input/output DMAs overlap compute and v7x's two
    TensorCores both get work.  VMEM accounting at bb=8192 (lane dim pads to
    128 in VMEM): 2x4 MiB x tiles + 2x4 MiB out tiles + ~12 MiB fp32/bf16
    intermediates ~= 28 MiB, safely under the 48 MiB limit below (v7x physical
    VMEM is 64 MiB; v5e/v6e have 128 MiB).
    """
    w1, b1, w2, b2, w3, b3 = params
    # One-time bf16 cast of the tiny (~30 KB) weights; biases stay fp32 and are
    # added to the fp32 MXU accumulator.
    w1, w2, w3 = (w.astype(jnp.bfloat16) for w in (w1, w2, w3))

    B_orig = x.shape[0]
    if B_orig < 8:  # sub-sublane batch: pad the handful of rows, slice after.
        x = jnp.pad(x, ((0, 8 - B_orig), (0, 0)))
    B = x.shape[0]

    target_steps = 4  # >=2 for pipelining, even so v7x's 2 TCs both get tiles
    bb = ((pl.cdiv(B, target_steps) + 7) // 8) * 8
    bb = max(8, min(bb, block_b))
    grid = (pl.cdiv(B, bb),)
    # No jnp.pad / out[:B] copies for ragged B: the partial last block reads
    # OOB rows (harmless, rows are independent) and OOB output rows are dropped.

    # Whole-array (resident) blocks for weights/biases (~30 KB); constant
    # index_maps mean no per-step re-fetch across the batch grid axis.
    # (pipeline_mode=pl.Buffered(1) would save ~30 KB of double-buffering;
    #  skipped as negligible.)
    full = lambda shp: pl.BlockSpec(shp, lambda i: tuple(0 for _ in shp))

    flops = 2 * B * (IN_F * H1 + H1 * H2 + H2 * OUT_F)
    w_bytes = 2 * (IN_F * H1 + H1 * H2 + H2 * OUT_F) + 4 * (H1 + H2 + OUT_F)
    cost = pl.CostEstimate(
        flops=flops,
        transcendentals=0,
        bytes_accessed=4 * B * (IN_F + OUT_F) + w_bytes,
    )

    out = pl.pallas_call(
        _mlp_kernel,
        out_shape=jax.ShapeDtypeStruct((B, OUT_F), jnp.float32),
        grid_spec=pltpu.PrefetchScalarGridSpec(
            num_scalar_prefetch=0,
            grid=grid,
            in_specs=[
                pl.BlockSpec((bb, IN_F), lambda i: (i, 0)),
                full((IN_F, H1)),
                full((1, H1)),
                full((H1, H2)),
                full((1, H2)),
                full((H2, OUT_F)),
                full((1, OUT_F)),
            ],
            out_specs=pl.BlockSpec((bb, OUT_F), lambda i: (i, 0)),
        ),
        compiler_params=pltpu.CompilerParams(
            # batch tiles shard across v7x's 2 TensorCores; no-op on v5e/v6e
            dimension_semantics=("parallel",),
            vmem_limit_bytes=48 * 1024 * 1024,
        ),
        cost_estimate=cost,
    )(x, w1, b1, w2, b2, w3, b3)
    return out[:B_orig] if B_orig != B else out


def init_params(key):
    """Deterministic init mimicking nn.Linear default U(-1/sqrt(fan_in), +)."""
    ks = jax.random.split(key, 6)

    def linear(kw, kb, fan_in, fan_out):
        bound = 1.0 / jnp.sqrt(fan_in)
        w = jax.random.uniform(kw, (fan_in, fan_out), jnp.float32, -bound, bound)
        b = jax.random.uniform(kb, (1, fan_out), jnp.float32, -bound, bound)
        return w, b

    w1, b1 = linear(ks[0], ks[1], IN_F, H1)
    w2, b2 = linear(ks[2], ks[3], H1, H2)
    w3, b3 = linear(ks[4], ks[5], H2, OUT_F)
    return (w1, b1, w2, b2, w3, b3)


def reference_forward(x, params):
    w1, b1, w2, b2, w3, b3 = params
    h = jax.nn.relu(x @ w1 + b1)
    h = jax.nn.relu(h @ w2 + b2)  # dropout is identity in eval
    return jax.nn.relu(h @ w3 + b3)


if __name__ == "__main__":
    key = jax.random.PRNGKey(0)
    k_x, k_x2, k_p = jax.random.split(key, 3)
    params = init_params(k_p)

    # Small smoke test (single tile).  bf16 matmuls vs fp32 reference -> use a
    # relaxed tolerance relative to the O(1) activation scale.
    B = 8
    x = jax.random.normal(k_x, (B, IN_F), jnp.float32)
    y = regressor_forward(x, params)
    jax.block_until_ready(y)
    y_ref = reference_forward(x, params)
    assert y.shape == (B, OUT_F)
    assert jnp.allclose(y, y_ref, atol=5e-2, rtol=5e-2), "mismatch vs reference"

    # Non-divisible batch + multi-step grid (exercises the partial last block,
    # no pad/slice HBM round trip).
    B2 = 200
    x2 = jax.random.normal(k_x2, (B2, IN_F), jnp.float32)
    y2 = regressor_forward(x2, params, block_b=64)
    jax.block_until_ready(y2)
    y2_ref = reference_forward(x2, params)
    assert y2.shape == (B2, OUT_F)
    assert jnp.allclose(y2, y2_ref, atol=5e-2, rtol=5e-2), "mismatch vs reference"

    print("KERNEL_OK")
</pallas_src>

<mosaic_0001>
module attributes {stable_mosaic.version = 11 : i64} {
  func.func @_mlp_kernel(%arg0: i32, %arg1: memref<8x15xf32, #tpu.memory_space<vmem>>, %arg2: memref<15x64xbf16, #tpu.memory_space<vmem>>, %arg3: memref<1x64xf32, #tpu.memory_space<vmem>>, %arg4: memref<64x64xbf16, #tpu.memory_space<vmem>>, %arg5: memref<1x64xf32, #tpu.memory_space<vmem>>, %arg6: memref<64x30xbf16, #tpu.memory_space<vmem>>, %arg7: memref<1x30xf32, #tpu.memory_space<vmem>>, %arg8: memref<8x30xf32, #tpu.memory_space<vmem>>) attributes {dimension_semantics = [#tpu.dimension_semantics<parallel>], iteration_bounds = array<i64: 1>, scalar_prefetch = 0 : i64, scratch_operands = 0 : i64, tpu.core_type = #tpu.core_type<tc>, window_params = [{transform_indices = @transform_0, window_bounds = array<i64: 8, 15>}, {pipeline_mode = #tpu.pipeline_mode<synchronous>, transform_indices = @transform_1, window_bounds = array<i64: 15, 64>}, {pipeline_mode = #tpu.pipeline_mode<synchronous>, transform_indices = @transform_2, window_bounds = array<i64: 1, 64>}, {pipeline_mode = #tpu.pipeline_mode<synchronous>, transform_indices = @transform_3, window_bounds = array<i64: 64, 64>}, {pipeline_mode = #tpu.pipeline_mode<synchronous>, transform_indices = @transform_4, window_bounds = array<i64: 1, 64>}, {pipeline_mode = #tpu.pipeline_mode<synchronous>, transform_indices = @transform_5, window_bounds = array<i64: 64, 30>}, {pipeline_mode = #tpu.pipeline_mode<synchronous>, transform_indices = @transform_6, window_bounds = array<i64: 1, 30>}, {transform_indices = @transform_7, window_bounds = array<i64: 8, 30>}]} {
    %c0 = arith.constant 0 : index
    %c0_0 = arith.constant 0 : index
    %0 = vector.load %arg1[%c0, %c0_0] : memref<8x15xf32, #tpu.memory_space<vmem>>, vector<8x15xf32>
    %1 = arith.truncf %0 : vector<8x15xf32> to vector<8x15xbf16>
    %c0_1 = arith.constant 0 : index
    %c0_2 = arith.constant 0 : index
    %2 = vector.load %arg2[%c0_1, %c0_2] : memref<15x64xbf16, #tpu.memory_space<vmem>>, vector<15x64xbf16>
    %cst = arith.constant dense<0.000000e+00> : vector<8x64xf32>
    %3 = tpu.matmul %1, %2, %cst {dimension_numbers = #tpu.dot_dimension_numbers<[1], [0], [0], [1], [0, 0, 1, 1], [], []>} : vector<8x15xbf16>, vector<15x64xbf16>, vector<8x64xf32> -> vector<8x64xf32>
    %c0_3 = arith.constant 0 : index
    %c0_4 = arith.constant 0 : index
    %4 = vector.load %arg3[%c0_3, %c0_4] : memref<1x64xf32, #tpu.memory_space<vmem>>, vector<1x64xf32>
    %5 = vector.broadcast %4 : vector<1x64xf32> to vector<8x64xf32>
    %6 = arith.addf %3, %5 : vector<8x64xf32>
    %cst_5 = arith.constant 0.000000e+00 : f32
    %7 = vector.broadcast %cst_5 : f32 to vector<8x64xf32>
    %8 = arith.maximumf %6, %7 : vector<8x64xf32>
    %9 = arith.truncf %8 : vector<8x64xf32> to vector<8x64xbf16>
    %c0_6 = arith.constant 0 : index
    %c0_7 = arith.constant 0 : index
    %10 = vector.load %arg4[%c0_6, %c0_7] : memref<64x64xbf16, #tpu.memory_space<vmem>>, vector<64x64xbf16>
    %cst_8 = arith.constant dense<0.000000e+00> : vector<8x64xf32>
    %11 = tpu.matmul %9, %10, %cst_8 {dimension_numbers = #tpu.dot_dimension_numbers<[1], [0], [0], [1], [0, 0, 1, 1], [], []>} : vector<8x64xbf16>, vector<64x64xbf16>, vector<8x64xf32> -> vector<8x64xf32>
    %c0_9 = arith.constant 0 : index
    %c0_10 = arith.constant 0 : index
    %12 = vector.load %arg5[%c0_9, %c0_10] : memref<1x64xf32, #tpu.memory_space<vmem>>, vector<1x64xf32>
    %13 = vector.broadcast %12 : vector<1x64xf32> to vector<8x64xf32>
    %14 = arith.addf %11, %13 : vector<8x64xf32>
    %cst_11 = arith.constant 0.000000e+00 : f32
    %15 = vector.broadcast %cst_11 : f32 to vector<8x64xf32>
    %16 = arith.maximumf %14, %15 : vector<8x64xf32>
    %17 = arith.truncf %16 : vector<8x64xf32> to vector<8x64xbf16>
    %c0_12 = arith.constant 0 : index
    %c0_13 = arith.constant 0 : index
    %18 = vector.load %arg6[%c0_12, %c0_13] : memref<64x30xbf16, #tpu.memory_space<vmem>>, vector<64x30xbf16>
    %cst_14 = arith.constant dense<0.000000e+00> : vector<8x30xf32>
    %19 = tpu.matmul %17, %18, %cst_14 {dimension_numbers = #tpu.dot_dimension_numbers<[1], [0], [0], [1], [0, 0, 1, 1], [], []>} : vector<8x64xbf16>, vector<64x30xbf16>, vector<8x30xf32> -> vector<8x30xf32>
    %c0_15 = arith.constant 0 : index
    %c0_16 = arith.constant 0 : index
    %20 = vector.load %arg7[%c0_15, %c0_16] : memref<1x30xf32, #tpu.memory_space<vmem>>, vector<1x30xf32>
    %21 = vector.broadcast %20 : vector<1x30xf32> to vector<8x30xf32>
    %22 = arith.addf %19, %21 : vector<8x30xf32>
    %cst_17 = arith.constant 0.000000e+00 : f32
    %23 = vector.broadcast %cst_17 : f32 to vector<8x30xf32>
    %24 = arith.maximumf %22, %23 : vector<8x30xf32>
    %c0_18 = arith.constant 0 : index
    %c0_19 = arith.constant 0 : index
    %25 = vector.load %arg8[%c0_18, %c0_19] : memref<8x30xf32, #tpu.memory_space<vmem>>, vector<8x30xf32>
    tpu.vector_store %arg8[%c0_18, %c0_19], %24 {strides = array<i32>} : memref<8x30xf32, #tpu.memory_space<vmem>>, vector<8x30xf32>,
    return
  }
  func.func @transform_0(%arg0: i32) -> (i32, i32) {
    %c0_i32 = arith.constant 0 : i32
    %c0_i32_0 = arith.constant 0 : i32
    return %arg0, %c0_i32 : i32, i32
  }
  func.func @transform_1(%arg0: i32) -> (i32, i32) {
    %c0_i32 = arith.constant 0 : i32
    %c0_i32_0 = arith.constant 0 : i32
    %c0_i32_1 = arith.constant 0 : i32
    return %c0_i32, %c0_i32_0 : i32, i32
  }
  func.func @transform_2(%arg0: i32) -> (i32, i32) {
    %c0_i32 = arith.constant 0 : i32
    %c0_i32_0 = arith.constant 0 : i32
    %c0_i32_1 = arith.constant 0 : i32
    return %c0_i32, %c0_i32_0 : i32, i32
  }
  func.func @transform_3(%arg0: i32) -> (i32, i32) {
    %c0_i32 = arith.constant 0 : i32
    %c0_i32_0 = arith.constant 0 : i32
    %c0_i32_1 = arith.constant 0 : i32
    return %c0_i32, %c0_i32_0 : i32, i32
  }
  func.func @transform_4(%arg0: i32) -> (i32, i32) {
    %c0_i32 = arith.constant 0 : i32
    %c0_i32_0 = arith.constant 0 : i32
    %c0_i32_1 = arith.constant 0 : i32
    return %c0_i32, %c0_i32_0 : i32, i32
  }
  func.func @transform_5(%arg0: i32) -> (i32, i32) {
    %c0_i32 = arith.constant 0 : i32
    %c0_i32_0 = arith.constant 0 : i32
    %c0_i32_1 = arith.constant 0 : i32
    return %c0_i32, %c0_i32_0 : i32, i32
  }
  func.func @transform_6(%arg0: i32) -> (i32, i32) {
    %c0_i32 = arith.constant 0 : i32
    %c0_i32_0 = arith.constant 0 : i32
    %c0_i32_1 = arith.constant 0 : i32
    return %c0_i32, %c0_i32_0 : i32, i32
  }
  func.func @transform_7(%arg0: i32) -> (i32, i32) {
    %c0_i32 = arith.constant 0 : i32
    %c0_i32_0 = arith.constant 0 : i32
    return %arg0, %c0_i32 : i32, i32
  }
}

</mosaic_0001>

<llo_original>
// kernel: regressor_forward.1
$region0: #{regressor_forward.1}
  #allocation0 [shape = 'u32[]', space=smem, size = 0x4, offset = 0x4, fixed_abs, tag = 'smem constant byte address 0x4 - core index']
  #allocation1 [shape = 'u32[144,128]{1,0:T(1,128)}', space=vmem, size = 0x12000, scoped, tag = 'internal scratch']
  %s0 = inlined_call_operand.vmem [shape: f32[8,15], index: 0, kind: input, shape index: {}]
  %s1 = inlined_call_operand.vmem [shape: bf16[15,64], index: 1, kind: input, shape index: {}]
  %s2 = inlined_call_operand.vmem [shape: f32[1,64], index: 2, kind: input, shape index: {}]
  %s3 = inlined_call_operand.vmem [shape: bf16[64,64], index: 3, kind: input, shape index: {}]
  %s4 = inlined_call_operand.vmem [shape: f32[1,64], index: 4, kind: input, shape index: {}]
  %s5 = inlined_call_operand.vmem [shape: bf16[64,30], index: 5, kind: input, shape index: {}]
  %s6 = inlined_call_operand.vmem [shape: f32[1,30], index: 6, kind: input, shape index: {}]
  %s7 = inlined_call_operand.hbm [shape: f32[8,30], index: 7, kind: output, shape index: {}]
  %s8 = sld [smem:[#allocation0]]
  $region38: #{regressor_forward.1} parent=0
    _
  %s10 = ssub.s32 1, %s8
  %s11 = scalar_select 0, %s10, %s8
  $region1: #{regressor_forward.1} parent=0
    #allocation2 [shape = 'u8[4096]{0}', space=vmem, size = 0x1000, scoped, tag = 'output window, operand 0, single buffered']
    #allocation3 [shape = 's32[1]{0}', space=sflag, size = 0x4, scoped, tag = 'scoped memory for regressor_forward.1']
    %12 = vsyncpa [#allocation3], 0
    // Predicated region
    $region2: #{regressor_forward.1} parent=1 // pred_check
      _
    $region3: #{regressor_forward.1} parent=1 // pred_check_branch
      %14 = sbr.rel (0) target = $region5
    $region4: #{regressor_forward.1} parent=1 // pred_region
      _
    $region5: #{regressor_forward.1} parent=1 // pred_fallthru
      _
    // Predicated region
    $region6: #{regressor_forward.1} parent=1 // pred_check
      _
    $region7: #{regressor_forward.1} parent=1 // pred_check_branch
      %16 = sbr.rel (0) target = $region9
    $region8: #{regressor_forward.1} parent=1 // pred_region
      _
    $region9: #{regressor_forward.1} parent=1 // pred_fallthru
      _
    // Predicated region
    $region10: #{regressor_forward.1} parent=1 // pred_check
      _
    $region11: #{regressor_forward.1} parent=1 // pred_check_branch
      %18 = sbr.rel (0) target = $region13
    $region12: #{regressor_forward.1} parent=1 // pred_region
      _
    $region13: #{regressor_forward.1} parent=1 // pred_fallthru
      _
    // Predicated region
    $region14: #{regressor_forward.1} parent=1 // pred_check
      _
    $region15: #{regressor_forward.1} parent=1 // pred_check_branch
      %20 = sbr.rel (0) target = $region17
    $region16: #{regressor_forward.1} parent=1 // pred_region
      _
    $region17: #{regressor_forward.1} parent=1 // pred_fallthru
      _
    // Predicated region
    $region18: #{regressor_forward.1} parent=1 // pred_check
      _
    $region19: #{regressor_forward.1} parent=1 // pred_check_branch
      %22 = sbr.rel (0) target = $region21
    $region20: #{regressor_forward.1} parent=1 // pred_region
      _
    $region21: #{regressor_forward.1} parent=1 // pred_fallthru
      _
    // Predicated region
    $region22: #{regressor_forward.1} parent=1 // pred_check
      _
    $region23: #{regressor_forward.1} parent=1 // pred_check_branch
      %24 = sbr.rel (0) target = $region25
    $region24: #{regressor_forward.1} parent=1 // pred_region
      _
    $region25: #{regressor_forward.1} parent=1 // pred_fallthru
      _
    // Predicated region
    $region26: #{regressor_forward.1} parent=1 // pred_check
      _
    $region27: #{regressor_forward.1} parent=1 // pred_check_branch
      %26 = sbr.rel (0) target = $region29
    $region28: #{regressor_forward.1} parent=1 // pred_region
      _
    $region29: #{regressor_forward.1} parent=1 // pred_fallthru
      _
    %v28 = vld [vmem:[%s0] sm:$0xff]
    %v29 = vpack.c.bf16 %v28, %v28
    %v30 = vld [vmem:[%s1] sm:$0xf]
    %v31 = vld [vmem:[%s1 + $0x4] sm:$0xf]
    %v32 = vld [vmem:[%s2] sm:$0x1]
    %v34 = vlaneseq
    %v35 = vshrl.u32 %v34, 7
    %v36 = vsub.s32 0, %v35
    %v37 = vrot.slane %v32, %v36
    %v41 = vunpack.c.l.b16 %v30
    %v42 = vunpack.c.l.b16 %v31
    %v43 = vpack.c.b16 %v42, %v41
    %vm44 = vcmask 121856
    %v46 = vsel %vm44, %v29, 0
    %vm48 = vcmask 1046528
    %vm49 = vcmask 1047552
    %v50 = vsel %vm48, 4294967295, 65535
    %v51 = vsel %vm49, %v50, 0
    %v53 = vand.u32 %v43, %v51
    %55 = vmatprep.subr.bf16.mxu0 0
    %56 = vmatpush1.bf16.msra.mxu0 %v53
    %57 = vmatprep.subr.bf16.mxu0 0
    %58 = vmatpush1.bf16.msra.mxu0 0
    %59 = vmatprep.subr.bf16.mxu0 0
    %60 = vmatpush1.bf16.msra.mxu0 0
    %61 = vmatprep.subr.bf16.mxu0 0
    %62 = vmatpush1.bf16.msra.mxu0 0
    %63 = vmatprep.subr.bf16.mxu0 0
    %64 = vmatpush1.bf16.msra.mxu0 0
    %65 = vmatprep.subr.bf16.mxu0 0
    %66 = vmatpush1.bf16.msra.mxu0 0
    %67 = vmatprep.subr.bf16.mxu0 0
    %68 = vmatpush1.bf16.msra.mxu0 0
    %69 = vmatprep.subr.bf16.mxu0 0
    %70 = vmatpush1.bf16.msra.mxu0 0
    %71 = vmatprep.subr.bf16.mxu0 0
    %72 = vmatpush1.bf16.msra.mxu0 0
    %73 = vmatprep.subr.bf16.mxu0 0
    %74 = vmatpush1.bf16.msra.mxu0 0
    %75 = vmatprep.subr.bf16.mxu0 0
    %76 = vmatpush1.bf16.msra.mxu0 0
    %77 = vmatprep.subr.bf16.mxu0 0
    %78 = vmatpush1.bf16.msra.mxu0 0
    %79 = vmatprep.subr.bf16.mxu0 0
    %80 = vmatpush1.bf16.msra.mxu0 0
    %81 = vmatprep.subr.bf16.mxu0 0
    %82 = vmatpush1.bf16.msra.mxu0 0
    %83 = vmatprep.subr.bf16.mxu0 0
    %84 = vmatpush1.bf16.msra.mxu0 0
    %85 = vmatprep.subr.bf16.mxu0 0
    %86 = vmatpush1.bf16.msra.mxu0 0
    %87 = vmatprep.mubr.bf16.mxu0 0
    %88 = vmatmul.mubr.bf16.gmra.mrb[0].mxu0 %v46
    %v89 = vpop.f32.mrb[0].mxu0
    %v90 = vadd.f32 %v37, %v89
    %v91 = vpop.f32.mrb[0].mxu0
    %v92 = vpop.f32.mrb[0].mxu0
    %v93 = vpop.f32.mrb[0].mxu0
    %94 = vdwg.mxu0
    %v95 = vmax.f32 %v90, 0.0
    %v96 = vpack.c.bf16 %v95, %v95
    %v97 = vld [vmem:[%s3] sm:$0xf]
    %v98 = vld [vmem:[%s3 + $0x4] sm:$0xf]
    %v99 = vld [vmem:[%s3 + $0x8] sm:$0xf]
    %v100 = vld [vmem:[%s3 + $0xc] sm:$0xf]
    %v101 = vld [vmem:[%s3 + $0x10] sm:$0xf]
    %v102 = vld [vmem:[%s3 + $0x14] sm:$0xf]
    %v103 = vld [vmem:[%s3 + $0x18] sm:$0xf]
    %v104 = vld [vmem:[%s3 + $0x1c] sm:$0xf]
    %v105 = vld [vmem:[%s4] sm:$0x1]
    %v107 = vlaneseq
    %v108 = vshrl.u32 %v107, 7
    %v109 = vsub.s32 0, %v108
    %v110 = vrot.slane %v105, %v109
    %v120 = vunpack.c.l.b16 %v97
    %v121 = vunpack.c.l.b16 %v98
    %v122 = vunpack.c.l.b16 %v99
    %v123 = vunpack.c.l.b16 %v100
    %v124 = vunpack.c.l.b16 %v101
    %v125 = vunpack.c.l.b16 %v102
    %v126 = vunpack.c.l.b16 %v103
    %v127 = vunpack.c.l.b16 %v104
    %v128 = vpack.c.b16 %v121, %v120
    %v129 = vpack.c.b16 %v123, %v122
    %v130 = vpack.c.b16 %v125, %v124
    %v131 = vpack.c.b16 %v127, %v126
    %vm136 = vcmask 523264
    %v138 = vsel %vm136, %v96, 0
    %140 = vmatprep.subr.bf16.mxu0 0
    %141 = vmatpush1.bf16.msra.mxu0 %v128
    %142 = vmatprep.subr.bf16.mxu0 0
    %143 = vmatpush1.bf16.msra.mxu0 %v129
    %144 = vmatprep.subr.bf16.mxu0 0
    %145 = vmatpush1.bf16.msra.mxu0 %v130
    %146 = vmatprep.subr.bf16.mxu0 0
    %147 = vmatpush1.bf16.msra.mxu0 %v131
    %148 = vmatprep.subr.bf16.mxu0 0
    %149 = vmatpush1.bf16.msra.mxu0 0
    %150 = vmatprep.subr.bf16.mxu0 0
    %151 = vmatpush1.bf16.msra.mxu0 0
    %152 = vmatprep.subr.bf16.mxu0 0
    %153 = vmatpush1.bf16.msra.mxu0 0
    %154 = vmatprep.subr.bf16.mxu0 0
    %155 = vmatpush1.bf16.msra.mxu0 0
    %156 = vmatprep.subr.bf16.mxu0 0
    %157 = vmatpush1.bf16.msra.mxu0 0
    %158 = vmatprep.subr.bf16.mxu0 0
    %159 = vmatpush1.bf16.msra.mxu0 0
    %160 = vmatprep.subr.bf16.mxu0 0
    %161 = vmatpush1.bf16.msra.mxu0 0
    %162 = vmatprep.subr.bf16.mxu0 0
    %163 = vmatpush1.bf16.msra.mxu0 0
    %164 = vmatprep.subr.bf16.mxu0 0
    %165 = vmatpush1.bf16.msra.mxu0 0
    %166 = vmatprep.subr.bf16.mxu0 0
    %167 = vmatpush1.bf16.msra.mxu0 0
    %168 = vmatprep.subr.bf16.mxu0 0
    %169 = vmatpush1.bf16.msra.mxu0 0
    %170 = vmatprep.subr.bf16.mxu0 0
    %171 = vmatpush1.bf16.msra.mxu0 0
    %172 = vmatprep.mubr.bf16.mxu0 0
    %173 = vmatmul.mubr.bf16.gmra.mrb[0].mxu0 %v138
    %v174 = vpop.f32.mrb[0].mxu0
    %v175 = vadd.f32 %v110, %v174
    %v176 = vpop.f32.mrb[0].mxu0
    %v177 = vpop.f32.mrb[0].mxu0
    %v178 = vpop.f32.mrb[0].mxu0
    %179 = vdwg.mxu0
    %v180 = vmax.f32 %v175, 0.0
    %v181 = vpack.c.bf16 %v180, %v180
    %v182 = vld [vmem:[%s5] sm:$0xf]
    %v183 = vld [vmem:[%s5 + $0x4] sm:$0xf]
    %v184 = vld [vmem:[%s5 + $0x8] sm:$0xf]
    %v185 = vld [vmem:[%s5 + $0xc] sm:$0xf]
    %v186 = vld [vmem:[%s5 + $0x10] sm:$0xf]
    %v187 = vld [vmem:[%s5 + $0x14] sm:$0xf]
    %v188 = vld [vmem:[%s5 + $0x18] sm:$0xf]
    %v189 = vld [vmem:[%s5 + $0x1c] sm:$0xf]
    %v190 = vld [vmem:[%s6] sm:$0x1]
    %v192 = vlaneseq
    %v193 = vshrl.u32 %v192, 7
    %v194 = vsub.s32 0, %v193
    %v195 = vrot.slane %v190, %v194
    %v205 = vunpack.c.l.b16 %v182
    %v206 = vunpack.c.l.b16 %v183
    %v207 = vunpack.c.l.b16 %v184
    %v208 = vunpack.c.l.b16 %v185
    %v209 = vunpack.c.l.b16 %v186
    %v210 = vunpack.c.l.b16 %v187
    %v211 = vunpack.c.l.b16 %v188
    %v212 = vunpack.c.l.b16 %v189
    %v213 = vpack.c.b16 %v206, %v205
    %v214 = vpack.c.b16 %v208, %v207
    %v215 = vpack.c.b16 %v210, %v209
    %v216 = vpack.c.b16 %v212, %v211
    %v222 = vsel %vm136, %v181, 0
    %224 = vmatprep.subr.bf16.mxu0 0
    %225 = vmatpush1.bf16.msra.mxu0 %v213
    %226 = vmatprep.subr.bf16.mxu0 0
    %227 = vmatpush1.bf16.msra.mxu0 %v214
    %228 = vmatprep.subr.bf16.mxu0 0
    %229 = vmatpush1.bf16.msra.mxu0 %v215
    %230 = vmatprep.subr.bf16.mxu0 0
    %231 = vmatpush1.bf16.msra.mxu0 %v216
    %232 = vmatprep.subr.bf16.mxu0 0
    %233 = vmatpush1.bf16.msra.mxu0 0
    %234 = vmatprep.subr.bf16.mxu0 0
    %235 = vmatpush1.bf16.msra.mxu0 0
    %236 = vmatprep.subr.bf16.mxu0 0
    %237 = vmatpush1.bf16.msra.mxu0 0
    %238 = vmatprep.subr.bf16.mxu0 0
    %239 = vmatpush1.bf16.msra.mxu0 0
    %240 = vmatprep.subr.bf16.mxu0 0
    %241 = vmatpush1.bf16.msra.mxu0 0
    %242 = vmatprep.subr.bf16.mxu0 0
    %243 = vmatpush1.bf16.msra.mxu0 0
    %244 = vmatprep.subr.bf16.mxu0 0
    %245 = vmatpush1.bf16.msra.mxu0 0
    %246 = vmatprep.subr.bf16.mxu0 0
    %247 = vmatpush1.bf16.msra.mxu0 0
    %248 = vmatprep.subr.bf16.mxu0 0
    %249 = vmatpush1.bf16.msra.mxu0 0
    %250 = vmatprep.subr.bf16.mxu0 0
    %251 = vmatpush1.bf16.msra.mxu0 0
    %252 = vmatprep.subr.bf16.mxu0 0
    %253 = vmatpush1.bf16.msra.mxu0 0
    %254 = vmatprep.subr.bf16.mxu0 0
    %255 = vmatpush1.bf16.msra.mxu0 0
    %256 = vmatprep.mubr.bf16.mxu0 0
    %257 = vmatmul.mubr.bf16.gmra.mrb[0].mxu0 %v222
    %v258 = vpop.f32.mrb[0].mxu0
    %v259 = vadd.f32 %v195, %v258
    %v260 = vpop.f32.mrb[0].mxu0
    %v261 = vpop.f32.mrb[0].mxu0
    %v262 = vpop.f32.mrb[0].mxu0
    %263 = vdwg.mxu0
    %v264 = vmax.f32 %v259, 0.0
    %vm265 = vcmask 244736
    %266 = vst.msk [vmem:[#allocation2] sm:$0xff] %vm265, %v264
    // Predicated region
    $region30: #{regressor_forward.1} parent=1 // pred_check
      _
    $region31: #{regressor_forward.1} parent=1 // pred_check_branch
      %268 = sbr.rel (0) target = $region33
    $region32: #{regressor_forward.1} parent=1 // pred_region
      %s270 = ssub.s32 128, 128
      %271 = vsyncadd [#allocation3], %s270
      %s273 = sshll.u32 [#allocation2], 4
      %s274 = int_to_ptr.vmem [resolvable:$true] %s273
      %276 = dma.vmem_to_hbm [thread:$0]  %s274, 128, %s7, [#allocation3]
    $region33: #{regressor_forward.1} parent=1 // pred_fallthru
      _
    // Predicated region
    $region34: #{regressor_forward.1} parent=1 // pred_check
      _
    $region35: #{regressor_forward.1} parent=1 // pred_check_branch
      %278 = sbr.rel (0) target = $region37
    $region36: #{regressor_forward.1} parent=1 // pred_region
      %279 = dma.done [#allocation3], 128
    $region37: #{regressor_forward.1} parent=1 // pred_fallthru
      _
    %280 = vsyncpa [#allocation3], 1

</llo_original>
